<compile_context>
chip_gen: v7x
topology: tpu7x:2x2x1
jax: 0.10.0
libtpu: 0.0.40
codegen_flags: <defaults>
</compile_context>

<pallas_src>
import functools
import math

import numpy as np
import jax
import jax.numpy as jnp
from jax import lax
from jax.experimental import pallas as pl
from jax.experimental.pallas import tpu as pltpu

BN_EPS = 1e-5
C1, C2 = 64, 128   # conv output widths fixed by the module


# ----------------------------- in-kernel helpers -----------------------------
def _bn_affine(s, q, count, gamma_row, beta_row):
    """Training-mode BatchNorm folded to a single per-channel (scale, shift)."""
    mu = s / count
    var = q / count - jnp.square(mu)          # biased variance (E[x^2] - E[x]^2)
    scale = lax.rsqrt(var + BN_EPS) * gamma_row
    shift = beta_row - mu * scale
    return scale, shift


# --------------------------------- kernel ------------------------------------
def temporal_cnn_kernel(x_ref, w1_ref, g1_ref, b1_ref, w2_ref, g2_ref, b2_ref,
                        o_ref, stage_ref, *, seq_len, cin):
    Rp = x_ref.shape[0]                 # N * L / 2 packed rows (two timesteps per row)
    seg = seq_len // 2                  # packed rows per batch element
    # row index within its batch, as a (Rp, 1) column (broadcasts for free in jnp.where)
    pos = lax.broadcasted_iota(jnp.int32, (Rp, 1), 0) % seg

    # ---------------- stage 1: Conv1d(cin->64), 2 timesteps packed per row ----------------
    x = x_ref[...]                                          # (Rp, 2*cin) = [x[2r] | x[2r+1]]
    xm = pltpu.roll(x[:, cin:], 1, axis=0)                  # x[2r-1] (prev row, odd half)
    xm = jnp.where(pos == 0, 0.0, xm)                       # zero-pad at batch start
    xp = pltpu.roll(x[:, :cin], Rp - 1, axis=0)             # x[2r+2] (next row, even half)
    xp = jnp.where(pos == seg - 1, 0.0, xp)                 # zero-pad at batch end
    im1 = jnp.concatenate([xm, x, xp], axis=-1)             # (Rp, 4*cin)

    # block-structured weight: cols 0:64 -> y[2r], cols 64:128 -> y[2r+1]; no conv bias
    # (training-mode BN cancels a per-channel constant exactly).
    y1 = jnp.dot(im1, w1_ref[...], preferred_element_type=jnp.float32)   # (Rp, 128)

    # BN stats over all N*L pre-pool positions = both lane halves, single sum/sumsq pass.
    y1e, y1o = y1[:, :C1], y1[:, C1:]
    s1 = jnp.sum(y1e, axis=0, keepdims=True) + jnp.sum(y1o, axis=0, keepdims=True)
    q1 = (jnp.sum(jnp.square(y1e), axis=0, keepdims=True)
          + jnp.sum(jnp.square(y1o), axis=0, keepdims=True))
    scale1, shift1 = _bn_affine(s1, q1, 2.0 * Rp, g1_ref[...], b1_ref[...])

    # MaxPool1d(2,2) = lane-slice max of the two halves; normalize+ReLU AFTER pooling
    # (valid because scale1 = gamma*rsqrt(var+eps) > 0 for gamma = 1 -> monotone).
    a1 = jnp.maximum(jnp.maximum(y1e, y1o) * scale1 + shift1, 0.0)       # (Rp, 64)

    # ---------------- stage 2: Conv1d(64->128) over the pooled sequence -------------------
    a1m = jnp.where(pos == 0, 0.0, pltpu.roll(a1, 1, axis=0))            # a1[r-1]
    a1p = jnp.where(pos == seg - 1, 0.0, pltpu.roll(a1, Rp - 1, axis=0)) # a1[r+1]
    im2 = jnp.concatenate([a1m, a1, a1p], axis=-1)                       # (Rp, 192)

    y2 = jnp.dot(im2, w2_ref[...], preferred_element_type=jnp.float32)   # (Rp, 128)

    s2 = jnp.sum(y2, axis=0, keepdims=True)
    q2 = jnp.sum(jnp.square(y2), axis=0, keepdims=True)
    scale2, shift2 = _bn_affine(s2, q2, float(Rp), g2_ref[...], b2_ref[...])

    # MaxPool1d(2,2) along rows: pair rows via an XLU roll, one staging store, one
    # sublane-strided compaction; normalize+ReLU on the pooled (Rp/2, 128) slab only.
    m = jnp.maximum(y2, pltpu.roll(y2, Rp - 1, axis=0))    # row r -> max(y2[r], y2[r+1])
    stage_ref[...] = m
    p2 = stage_ref[pl.ds(0, Rp // 2, stride=2), :]         # even rows = pooled pairs
    o_ref[...] = jnp.maximum(p2 * scale2 + shift2, 0.0).astype(o_ref.dtype)


# -------------------------------- wrapper ------------------------------------
def _vmem_limit_bytes():
    # Size the VMEM cap from the actual chip with ~20% headroom for Mosaic internal scratch
    # (review item), instead of a hard-coded 64 MiB.
    try:
        cap = int(pltpu.get_tpu_info().vmem_capacity_bytes)
    except Exception:
        cap = 64 << 20
    return max(int(cap * 0.8), 16 << 20)


def temporal_cnn_forward(x_ncl, params):
    N, Cin, L = x_ncl.shape
    assert L % 4 == 0, "two MaxPool1d(2,2) stages require L % 4 == 0"
    Rp = N * L // 2                    # packed rows (two timesteps per row)

    # channels-last, two timesteps packed per row: row r = [x[n, 2p, :] | x[n, 2p+1, :]]
    x_packed = jnp.transpose(x_ncl, (0, 2, 1)).astype(jnp.float32).reshape(Rp, 2 * Cin)

    # im2col weight layout (row k*Cin + ci holds w_torch[:, ci, k]); stage-1 weight is the
    # block-structured packed version: rows 0:3Cin drive the even timestep (cols 0:64),
    # rows Cin:4Cin drive the odd timestep (cols 64:128).  Conv biases are dropped (BN cancels).
    w1_i2c = jnp.transpose(params["w1"], (2, 1, 0)).reshape(3 * Cin, C1)
    w1p = jnp.zeros((4 * Cin, 2 * C1), jnp.float32)
    w1p = w1p.at[:3 * Cin, :C1].set(w1_i2c)
    w1p = w1p.at[Cin:, C1:].set(w1_i2c)
    w2 = jnp.transpose(params["w2"], (2, 1, 0)).reshape(3 * C1, C2)

    g1, b1 = params["g1"].reshape(1, C1), params["b1"].reshape(1, C1)
    g2, b2 = params["g2"].reshape(1, C2), params["b2"].reshape(1, C2)

    def full(shape):
        return pl.BlockSpec(shape, lambda i, s=shape: (0,) * len(s))

    out = pl.pallas_call(
        functools.partial(temporal_cnn_kernel, seq_len=L, cin=Cin),
        out_shape=jax.ShapeDtypeStruct((Rp // 2, C2), jnp.float32),
        grid_spec=pltpu.PrefetchScalarGridSpec(
            num_scalar_prefetch=0,
            grid=(1,),
            in_specs=[full((Rp, 2 * Cin)),
                      full((4 * Cin, 2 * C1)), full((1, C1)), full((1, C1)),
                      full((3 * C1, C2)), full((1, C2)), full((1, C2))],
            out_specs=full((Rp // 2, C2)),
            scratch_shapes=[pltpu.VMEM((Rp, C2), jnp.float32)]),
        compiler_params=pltpu.CompilerParams(
            dimension_semantics=("arbitrary",),
            vmem_limit_bytes=_vmem_limit_bytes()),
    )(x_packed, w1p, g1, b1, w2, g2, b2)

    # packed rows -> PyTorch NCL output (N, 128, L//4)
    return jnp.transpose(out.reshape(N, L // 4, C2), (0, 2, 1))


# ------------------------- deterministic parameters --------------------------
def init_params(key, input_size=8):
    ks = jax.random.split(key, 4)
    bound1 = 1.0 / math.sqrt(input_size * 3)
    bound2 = 1.0 / math.sqrt(C1 * 3)
    return dict(
        w1=jax.random.uniform(ks[0], (C1, input_size, 3), jnp.float32, -bound1, bound1),
        cb1=jax.random.uniform(ks[1], (C1,), jnp.float32, -bound1, bound1),
        g1=jnp.ones((C1,), jnp.float32), b1=jnp.zeros((C1,), jnp.float32),
        w2=jax.random.uniform(ks[2], (C2, C1, 3), jnp.float32, -bound2, bound2),
        cb2=jax.random.uniform(ks[3], (C2,), jnp.float32, -bound2, bound2),
        g2=jnp.ones((C2,), jnp.float32), b2=jnp.zeros((C2,), jnp.float32),
    )


# ---------------------------- pure-JAX reference -----------------------------
def reference_forward(x_ncl, params):
    # Includes the conv biases and the canonical conv->BN->ReLU->pool order, so the
    # bias-cancellation and pool-before-affine rewrites in the kernel are validated against it.
    def block(x, w, cb, g, b):
        y = lax.conv_general_dilated(x, w, window_strides=(1,), padding=((1, 1),),
                                     dimension_numbers=("NCH", "OIH", "NCH"))
        y = y + cb[None, :, None]
        mu = jnp.mean(y, axis=(0, 2), keepdims=True)
        var = jnp.mean((y - mu) ** 2, axis=(0, 2), keepdims=True)
        y = (y - mu) / jnp.sqrt(var + BN_EPS) * g[None, :, None] + b[None, :, None]
        y = jnp.maximum(y, 0.0)
        N, C, L = y.shape
        return y.reshape(N, C, L // 2, 2).max(axis=-1)

    y = block(x_ncl, params["w1"], params["cb1"], params["g1"], params["b1"])
    y = block(y, params["w2"], params["cb2"], params["g2"], params["b2"])
    return y


if __name__ == "__main__":
    key = jax.random.PRNGKey(0)
    kx, kp = jax.random.split(key)
    N, Cin, L = 2, 8, 16                       # PyTorch input: (batch, channels=input_size, seq)
    x = jax.random.normal(kx, (N, Cin, L), jnp.float32)
    params = init_params(kp, input_size=Cin)

    out = temporal_cnn_forward(x, params)
    out = jax.block_until_ready(out)

    ref = reference_forward(x, params)
    assert out.shape == (N, C2, L // 4), out.shape
    np.testing.assert_allclose(np.asarray(out), np.asarray(ref), rtol=1e-3, atol=1e-3)
    print("KERNEL_OK")
</pallas_src>

<mosaic_0001>
module attributes {stable_mosaic.version = 11 : i64} {
  func.func @temporal_cnn_kernel(%arg0: i32, %arg1: memref<16x16xf32, #tpu.memory_space<vmem>>, %arg2: memref<32x128xf32, #tpu.memory_space<vmem>>, %arg3: memref<1x64xf32, #tpu.memory_space<vmem>>, %arg4: memref<1x64xf32, #tpu.memory_space<vmem>>, %arg5: memref<192x128xf32, #tpu.memory_space<vmem>>, %arg6: memref<1x128xf32, #tpu.memory_space<vmem>>, %arg7: memref<1x128xf32, #tpu.memory_space<vmem>>, %arg8: memref<8x128xf32, #tpu.memory_space<vmem>>, %arg9: memref<16x128xf32, #tpu.memory_space<vmem>>) attributes {dimension_semantics = [#tpu.dimension_semantics<arbitrary>], iteration_bounds = array<i64: 1>, scalar_prefetch = 0 : i64, scratch_operands = 1 : i64, tpu.core_type = #tpu.core_type<tc>, window_params = [{pipeline_mode = #tpu.pipeline_mode<synchronous>, transform_indices = @transform_0, window_bounds = array<i64: 16, 16>}, {pipeline_mode = #tpu.pipeline_mode<synchronous>, transform_indices = @transform_1, window_bounds = array<i64: 32, 128>}, {pipeline_mode = #tpu.pipeline_mode<synchronous>, transform_indices = @transform_2, window_bounds = array<i64: 1, 64>}, {pipeline_mode = #tpu.pipeline_mode<synchronous>, transform_indices = @transform_3, window_bounds = array<i64: 1, 64>}, {pipeline_mode = #tpu.pipeline_mode<synchronous>, transform_indices = @transform_4, window_bounds = array<i64: 192, 128>}, {pipeline_mode = #tpu.pipeline_mode<synchronous>, transform_indices = @transform_5, window_bounds = array<i64: 1, 128>}, {pipeline_mode = #tpu.pipeline_mode<synchronous>, transform_indices = @transform_6, window_bounds = array<i64: 1, 128>}, {pipeline_mode = #tpu.pipeline_mode<synchronous>, transform_indices = @transform_7, window_bounds = array<i64: 8, 128>}]} {
    %0 = tpu.iota {dimensions = array<i32: 0>} : vector<16x1xi32>
    %c8_i32 = arith.constant 8 : i32
    %c0_i32 = arith.constant 0 : i32
    %1 = arith.cmpi eq, %c8_i32, %c0_i32 : i32
    %c1_i32 = arith.constant 1 : i32
    %2 = arith.select %1, %c1_i32, %c8_i32 : i32
    %3 = vector.broadcast %2 : i32 to vector<16x1xi32>
    %4 = arith.remsi %0, %3 : vector<16x1xi32>
    %c0_i32_0 = arith.constant 0 : i32
    %5 = vector.broadcast %c0_i32_0 : i32 to vector<16x1xi32>
    %6 = arith.cmpi ne, %4, %5 : vector<16x1xi32>
    %c0_i32_1 = arith.constant 0 : i32
    %7 = vector.broadcast %c0_i32_1 : i32 to vector<16x1xi32>
    %8 = arith.cmpi slt, %4, %7 : vector<16x1xi32>
    %c0_i32_2 = arith.constant 0 : i32
    %9 = arith.cmpi slt, %2, %c0_i32_2 : i32
    %10 = vector.broadcast %9 : i1 to vector<16x1xi1>
    %11 = vector.broadcast %10 : vector<16x1xi1> to vector<16x1xi1>
    %12 = arith.xori %8, %11 : vector<16x1xi1>
    %13 = arith.andi %12, %6 : vector<16x1xi1>
    %14 = vector.broadcast %2 : i32 to vector<16x1xi32>
    %15 = arith.addi %4, %14 : vector<16x1xi32>
    %16 = arith.select %13, %15, %4 : vector<16x1xi1>, vector<16x1xi32>
    %c0 = arith.constant 0 : index
    %c0_3 = arith.constant 0 : index
    %17 = vector.load %arg1[%c0, %c0_3] : memref<16x16xf32, #tpu.memory_space<vmem>>, vector<16x16xf32>
    %18 = vector.extract_strided_slice %17 {offsets = [0, 8], sizes = [16, 8], strides = [1, 1]} : vector<16x16xf32> to vector<16x8xf32>
    %c1_i32_4 = arith.constant 1 : i32
    %19 = tpu.dynamic_rotate %18 by %c1_i32_4 dim 0 : vector<16x8xf32>, i32 -> vector<16x8xf32>
    %c0_i32_5 = arith.constant 0 : i32
    %20 = vector.broadcast %c0_i32_5 : i32 to vector<16x1xi32>
    %21 = arith.cmpi eq, %16, %20 : vector<16x1xi32>
    %cst = arith.constant 0.000000e+00 : f32
    %22 = vector.shape_cast %21 : vector<16x1xi1> to vector<16x1xi1>
    %23 = vector.broadcast %22 : vector<16x1xi1> to vector<16x8xi1>
    %24 = vector.broadcast %cst : f32 to vector<16x8xf32>
    %25 = arith.select %23, %24, %19 : vector<16x8xi1>, vector<16x8xf32>
    %26 = vector.extract_strided_slice %17 {offsets = [0, 0], sizes = [16, 8], strides = [1, 1]} : vector<16x16xf32> to vector<16x8xf32>
    %c15_i32 = arith.constant 15 : i32
    %27 = tpu.dynamic_rotate %26 by %c15_i32 dim 0 : vector<16x8xf32>, i32 -> vector<16x8xf32>
    %c7_i32 = arith.constant 7 : i32
    %28 = vector.broadcast %c7_i32 : i32 to vector<16x1xi32>
    %29 = arith.cmpi eq, %16, %28 : vector<16x1xi32>
    %cst_6 = arith.constant 0.000000e+00 : f32
    %30 = vector.shape_cast %29 : vector<16x1xi1> to vector<16x1xi1>
    %31 = vector.broadcast %30 : vector<16x1xi1> to vector<16x8xi1>
    %32 = vector.broadcast %cst_6 : f32 to vector<16x8xf32>
    %33 = arith.select %31, %32, %27 : vector<16x8xi1>, vector<16x8xf32>
    %34 = tpu.concatenate %25, %17, %33 in 1 : vector<16x8xf32>, vector<16x16xf32>, vector<16x8xf32> -> vector<16x32xf32>
    %c0_7 = arith.constant 0 : index
    %c0_8 = arith.constant 0 : index
    %35 = vector.load %arg2[%c0_7, %c0_8] : memref<32x128xf32, #tpu.memory_space<vmem>>, vector<32x128xf32>
    %cst_9 = arith.constant dense<0.000000e+00> : vector<16x128xf32>
    %36 = tpu.matmul %34, %35, %cst_9 {dimension_numbers = #tpu.dot_dimension_numbers<[1], [0], [0], [1], [0, 0, 1, 1], [], []>} : vector<16x32xf32>, vector<32x128xf32>, vector<16x128xf32> -> vector<16x128xf32>
    %37 = vector.extract_strided_slice %36 {offsets = [0, 0], sizes = [16, 64], strides = [1, 1]} : vector<16x128xf32> to vector<16x64xf32>
    %38 = vector.extract_strided_slice %36 {offsets = [0, 64], sizes = [16, 64], strides = [1, 1]} : vector<16x128xf32> to vector<16x64xf32>
    %cst_10 = arith.constant dense<0.000000e+00> : vector<64xf32>
    %39 = vector.multi_reduction <add>, %37, %cst_10 [0] : vector<16x64xf32> to vector<64xf32>
    %40 = vector.shape_cast %39 : vector<64xf32> to vector<1x64xf32>
    %cst_11 = arith.constant dense<0.000000e+00> : vector<64xf32>
    %41 = vector.multi_reduction <add>, %38, %cst_11 [0] : vector<16x64xf32> to vector<64xf32>
    %42 = vector.shape_cast %41 : vector<64xf32> to vector<1x64xf32>
    %43 = arith.addf %40, %42 : vector<1x64xf32>
    %44 = arith.mulf %37, %37 : vector<16x64xf32>
    %cst_12 = arith.constant dense<0.000000e+00> : vector<64xf32>
    %45 = vector.multi_reduction <add>, %44, %cst_12 [0] : vector<16x64xf32> to vector<64xf32>
    %46 = vector.shape_cast %45 : vector<64xf32> to vector<1x64xf32>
    %47 = arith.mulf %38, %38 : vector<16x64xf32>
    %cst_13 = arith.constant dense<0.000000e+00> : vector<64xf32>
    %48 = vector.multi_reduction <add>, %47, %cst_13 [0] : vector<16x64xf32> to vector<64xf32>
    %49 = vector.shape_cast %48 : vector<64xf32> to vector<1x64xf32>
    %50 = arith.addf %46, %49 : vector<1x64xf32>
    %c0_14 = arith.constant 0 : index
    %c0_15 = arith.constant 0 : index
    %51 = vector.load %arg3[%c0_14, %c0_15] : memref<1x64xf32, #tpu.memory_space<vmem>>, vector<1x64xf32>
    %c0_16 = arith.constant 0 : index
    %c0_17 = arith.constant 0 : index
    %52 = vector.load %arg4[%c0_16, %c0_17] : memref<1x64xf32, #tpu.memory_space<vmem>>, vector<1x64xf32>
    %cst_18 = arith.constant 3.200000e+01 : f32
    %53 = vector.broadcast %cst_18 : f32 to vector<1x64xf32>
    %54 = arith.divf %43, %53 : vector<1x64xf32>
    %cst_19 = arith.constant 3.200000e+01 : f32
    %55 = vector.broadcast %cst_19 : f32 to vector<1x64xf32>
    %56 = arith.divf %50, %55 : vector<1x64xf32>
    %57 = arith.mulf %54, %54 : vector<1x64xf32>
    %58 = arith.subf %56, %57 : vector<1x64xf32>
    %cst_20 = arith.constant 9.99999974E-6 : f32
    %59 = vector.broadcast %cst_20 : f32 to vector<1x64xf32>
    %60 = arith.addf %58, %59 : vector<1x64xf32>
    %61 = math.rsqrt %60 : vector<1x64xf32>
    %62 = arith.mulf %61, %51 : vector<1x64xf32>
    %63 = arith.mulf %54, %62 : vector<1x64xf32>
    %64 = arith.subf %52, %63 : vector<1x64xf32>
    %65 = arith.maximumf %37, %38 : vector<16x64xf32>
    %66 = vector.broadcast %62 : vector<1x64xf32> to vector<16x64xf32>
    %67 = arith.mulf %65, %66 : vector<16x64xf32>
    %68 = vector.broadcast %64 : vector<1x64xf32> to vector<16x64xf32>
    %69 = arith.addf %67, %68 : vector<16x64xf32>
    %cst_21 = arith.constant 0.000000e+00 : f32
    %70 = vector.broadcast %cst_21 : f32 to vector<16x64xf32>
    %71 = arith.maximumf %69, %70 : vector<16x64xf32>
    %c0_i32_22 = arith.constant 0 : i32
    %72 = vector.broadcast %c0_i32_22 : i32 to vector<16x1xi32>
    %73 = arith.cmpi eq, %16, %72 : vector<16x1xi32>
    %c1_i32_23 = arith.constant 1 : i32
    %74 = tpu.dynamic_rotate %71 by %c1_i32_23 dim 0 : vector<16x64xf32>, i32 -> vector<16x64xf32>
    %cst_24 = arith.constant 0.000000e+00 : f32
    %75 = vector.shape_cast %73 : vector<16x1xi1> to vector<16x1xi1>
    %76 = vector.broadcast %75 : vector<16x1xi1> to vector<16x64xi1>
    %77 = vector.broadcast %cst_24 : f32 to vector<16x64xf32>
    %78 = arith.select %76, %77, %74 : vector<16x64xi1>, vector<16x64xf32>
    %c7_i32_25 = arith.constant 7 : i32
    %79 = vector.broadcast %c7_i32_25 : i32 to vector<16x1xi32>
    %80 = arith.cmpi eq, %16, %79 : vector<16x1xi32>
    %c15_i32_26 = arith.constant 15 : i32
    %81 = tpu.dynamic_rotate %71 by %c15_i32_26 dim 0 : vector<16x64xf32>, i32 -> vector<16x64xf32>
    %cst_27 = arith.constant 0.000000e+00 : f32
    %82 = vector.shape_cast %80 : vector<16x1xi1> to vector<16x1xi1>
    %83 = vector.broadcast %82 : vector<16x1xi1> to vector<16x64xi1>
    %84 = vector.broadcast %cst_27 : f32 to vector<16x64xf32>
    %85 = arith.select %83, %84, %81 : vector<16x64xi1>, vector<16x64xf32>
    %86 = tpu.concatenate %78, %71, %85 in 1 : vector<16x64xf32>, vector<16x64xf32>, vector<16x64xf32> -> vector<16x192xf32>
    %c0_28 = arith.constant 0 : index
    %c0_29 = arith.constant 0 : index
    %87 = vector.load %arg5[%c0_28, %c0_29] : memref<192x128xf32, #tpu.memory_space<vmem>>, vector<192x128xf32>
    %cst_30 = arith.constant dense<0.000000e+00> : vector<16x128xf32>
    %88 = tpu.matmul %86, %87, %cst_30 {dimension_numbers = #tpu.dot_dimension_numbers<[1], [0], [0], [1], [0, 0, 1, 1], [], []>} : vector<16x192xf32>, vector<192x128xf32>, vector<16x128xf32> -> vector<16x128xf32>
    %cst_31 = arith.constant dense<0.000000e+00> : vector<128xf32>
    %89 = vector.multi_reduction <add>, %88, %cst_31 [0] : vector<16x128xf32> to vector<128xf32>
    %90 = vector.shape_cast %89 : vector<128xf32> to vector<1x128xf32>
    %91 = arith.mulf %88, %88 : vector<16x128xf32>
    %cst_32 = arith.constant dense<0.000000e+00> : vector<128xf32>
    %92 = vector.multi_reduction <add>, %91, %cst_32 [0] : vector<16x128xf32> to vector<128xf32>
    %93 = vector.shape_cast %92 : vector<128xf32> to vector<1x128xf32>
    %c0_33 = arith.constant 0 : index
    %c0_34 = arith.constant 0 : index
    %94 = vector.load %arg6[%c0_33, %c0_34] : memref<1x128xf32, #tpu.memory_space<vmem>>, vector<1x128xf32>
    %c0_35 = arith.constant 0 : index
    %c0_36 = arith.constant 0 : index
    %95 = vector.load %arg7[%c0_35, %c0_36] : memref<1x128xf32, #tpu.memory_space<vmem>>, vector<1x128xf32>
    %cst_37 = arith.constant 1.600000e+01 : f32
    %96 = vector.broadcast %cst_37 : f32 to vector<1x128xf32>
    %97 = arith.divf %90, %96 : vector<1x128xf32>
    %cst_38 = arith.constant 1.600000e+01 : f32
    %98 = vector.broadcast %cst_38 : f32 to vector<1x128xf32>
    %99 = arith.divf %93, %98 : vector<1x128xf32>
    %100 = arith.mulf %97, %97 : vector<1x128xf32>
    %101 = arith.subf %99, %100 : vector<1x128xf32>
    %cst_39 = arith.constant 9.99999974E-6 : f32
    %102 = vector.broadcast %cst_39 : f32 to vector<1x128xf32>
    %103 = arith.addf %101, %102 : vector<1x128xf32>
    %104 = math.rsqrt %103 : vector<1x128xf32>
    %105 = arith.mulf %104, %94 : vector<1x128xf32>
    %106 = arith.mulf %97, %105 : vector<1x128xf32>
    %107 = arith.subf %95, %106 : vector<1x128xf32>
    %c15_i32_40 = arith.constant 15 : i32
    %108 = tpu.dynamic_rotate %88 by %c15_i32_40 dim 0 : vector<16x128xf32>, i32 -> vector<16x128xf32>
    %109 = arith.maximumf %88, %108 : vector<16x128xf32>
    %c0_41 = arith.constant 0 : index
    %c0_42 = arith.constant 0 : index
    %110 = vector.load %arg9[%c0_41, %c0_42] : memref<16x128xf32, #tpu.memory_space<vmem>>, vector<16x128xf32>
    tpu.vector_store %arg9[%c0_41, %c0_42], %109 {strides = array<i32>} : memref<16x128xf32, #tpu.memory_space<vmem>>, vector<16x128xf32>,
    %c0_43 = arith.constant 0 : index
    %c0_44 = arith.constant 0 : index
    %111 = tpu.strided_load %arg9[%c0_43, %c0_44] {strides = array<i32: 2, 1>} : memref<16x128xf32, #tpu.memory_space<vmem>>, vector<8x128xf32>
    %112 = vector.broadcast %105 : vector<1x128xf32> to vector<8x128xf32>
    %113 = arith.mulf %111, %112 : vector<8x128xf32>
    %114 = vector.broadcast %107 : vector<1x128xf32> to vector<8x128xf32>
    %115 = arith.addf %113, %114 : vector<8x128xf32>
    %cst_45 = arith.constant 0.000000e+00 : f32
    %116 = vector.broadcast %cst_45 : f32 to vector<8x128xf32>
    %117 = arith.maximumf %115, %116 : vector<8x128xf32>
    %c0_46 = arith.constant 0 : index
    %c0_47 = arith.constant 0 : index
    %118 = vector.load %arg8[%c0_46, %c0_47] : memref<8x128xf32, #tpu.memory_space<vmem>>, vector<8x128xf32>
    tpu.vector_store %arg8[%c0_46, %c0_47], %117 {strides = array<i32>} : memref<8x128xf32, #tpu.memory_space<vmem>>, vector<8x128xf32>,
    return
  }
  func.func @transform_0(%arg0: i32) -> (i32, i32) {
    %c0_i32 = arith.constant 0 : i32
    %c0_i32_0 = arith.constant 0 : i32
    %c0_i32_1 = arith.constant 0 : i32
    return %c0_i32, %c0_i32_0 : i32, i32
  }
  func.func @transform_1(%arg0: i32) -> (i32, i32) {
    %c0_i32 = arith.constant 0 : i32
    %c0_i32_0 = arith.constant 0 : i32
    %c0_i32_1 = arith.constant 0 : i32
    return %c0_i32, %c0_i32_0 : i32, i32
  }
  func.func @transform_2(%arg0: i32) -> (i32, i32) {
    %c0_i32 = arith.constant 0 : i32
    %c0_i32_0 = arith.constant 0 : i32
    %c0_i32_1 = arith.constant 0 : i32
    return %c0_i32, %c0_i32_0 : i32, i32
  }
  func.func @transform_3(%arg0: i32) -> (i32, i32) {
    %c0_i32 = arith.constant 0 : i32
    %c0_i32_0 = arith.constant 0 : i32
    %c0_i32_1 = arith.constant 0 : i32
    return %c0_i32, %c0_i32_0 : i32, i32
  }
  func.func @transform_4(%arg0: i32) -> (i32, i32) {
    %c0_i32 = arith.constant 0 : i32
    %c0_i32_0 = arith.constant 0 : i32
    %c0_i32_1 = arith.constant 0 : i32
    return %c0_i32, %c0_i32_0 : i32, i32
  }
  func.func @transform_5(%arg0: i32) -> (i32, i32) {
    %c0_i32 = arith.constant 0 : i32
    %c0_i32_0 = arith.constant 0 : i32
    %c0_i32_1 = arith.constant 0 : i32
    return %c0_i32, %c0_i32_0 : i32, i32
  }
  func.func @transform_6(%arg0: i32) -> (i32, i32) {
    %c0_i32 = arith.constant 0 : i32
    %c0_i32_0 = arith.constant 0 : i32
    %c0_i32_1 = arith.constant 0 : i32
    return %c0_i32, %c0_i32_0 : i32, i32
  }
  func.func @transform_7(%arg0: i32) -> (i32, i32) {
    %c0_i32 = arith.constant 0 : i32
    %c0_i32_0 = arith.constant 0 : i32
    %c0_i32_1 = arith.constant 0 : i32
    return %c0_i32, %c0_i32_0 : i32, i32
  }
}

</mosaic_0001>

<llo_original>
// kernel: tpu_custom_call.1
$region0: #{tpu_custom_call.1}
  #allocation0 [shape = 'u32[]', space=smem, size = 0x4, offset = 0x4, fixed_abs, tag = 'smem constant byte address 0x4 - core index']
  #allocation1 [shape = 'u32[144,128]{1,0:T(1,128)}', space=vmem, size = 0x12000, scoped, tag = 'internal scratch']
  #allocation2 [shape = 'f32[16,128]{1,0:T(8,128)}', space=vmem, size = 0x2000, scoped, tag = 'scratch operand']
  %s0 = inlined_call_operand.hbm [shape: f32[16,16], index: 0, kind: input, shape index: {}]
  %s1 = inlined_call_operand.hbm [shape: f32[32,128], index: 1, kind: input, shape index: {}]
  %s2 = inlined_call_operand.vmem [shape: f32[1,64], index: 2, kind: input, shape index: {}]
  %s3 = inlined_call_operand.vmem [shape: f32[1,64], index: 3, kind: input, shape index: {}]
  %s4 = inlined_call_operand.hbm [shape: f32[192,128], index: 4, kind: input, shape index: {}]
  %s5 = inlined_call_operand.vmem [shape: f32[1,128], index: 5, kind: input, shape index: {}]
  %s6 = inlined_call_operand.vmem [shape: f32[1,128], index: 6, kind: input, shape index: {}]
  %s7 = inlined_call_operand.hbm [shape: f32[8,128], index: 7, kind: output, shape index: {}]
  %s8 = sld [smem:[#allocation0]]
  $region50: #{tpu_custom_call.1} parent=0
    _
  %s10 = ssub.s32 1, %s8
  %s11 = scalar_select 0, %s10, %s8
  $region1: #{tpu_custom_call.1} parent=0
    #allocation3 [shape = 'u8[8192]{0}', space=vmem, size = 0x2000, scoped, tag = 'input window, operand 0, single buffered']
    #allocation4 [shape = 's32[1]{0}', space=sflag, size = 0x4, scoped, tag = 'scoped memory for tpu_custom_call.1']
    #allocation5 [shape = 's32[1]{0}', space=sflag, size = 0x4, scoped, tag = 'scoped memory for tpu_custom_call.1']
    #allocation6 [shape = 'u8[16384]{0}', space=vmem, size = 0x4000, scoped, tag = 'input window, operand 1, single buffered']
    #allocation7 [shape = 's32[1]{0}', space=sflag, size = 0x4, scoped, tag = 'scoped memory for tpu_custom_call.1']
    #allocation8 [shape = 'u8[98304]{0}', space=vmem, size = 0x18000, scoped, tag = 'input window, operand 4, single buffered']
    #allocation9 [shape = 'u8[4096]{0}', space=vmem, size = 0x1000, scoped, tag = 'output window, operand 0, single buffered']
    %12 = vsyncpa [#allocation4], 0
    %13 = vsyncpa [#allocation7], 0
    %14 = vsyncpa [#allocation5], 0
    // Predicated region
    $region2: #{tpu_custom_call.1} parent=1 // pred_check
      _
    $region3: #{tpu_custom_call.1} parent=1 // pred_check_branch
      %16 = sbr.rel (0) target = $region5
    $region4: #{tpu_custom_call.1} parent=1 // pred_region
      %s18 = ssub.s32 256, 256
      %19 = vsyncadd [#allocation4], %s18
      %s20 = sshll.u32 [#allocation3], 4
      %s21 = int_to_ptr.vmem [resolvable:$true] %s20
      %26 = dma.hbm_to_vmem [thread:$0]  %s0, 256, %s21, [#allocation4], 128, 128, 8
    $region5: #{tpu_custom_call.1} parent=1 // pred_fallthru
      _
    // Predicated region
    $region6: #{tpu_custom_call.1} parent=1 // pred_check
      _
    $region7: #{tpu_custom_call.1} parent=1 // pred_check_branch
      %28 = sbr.rel (0) target = $region9
    $region8: #{tpu_custom_call.1} parent=1 // pred_region
      %s30 = ssub.s32 512, 512
      %31 = vsyncadd [#allocation7], %s30
      %s32 = sshll.u32 [#allocation6], 4
      %s33 = int_to_ptr.vmem [resolvable:$true] %s32
      %38 = dma.hbm_to_vmem [thread:$0]  %s1, 512, %s33, [#allocation7], 128, 128, 8
    $region9: #{tpu_custom_call.1} parent=1 // pred_fallthru
      _
    // Predicated region
    $region10: #{tpu_custom_call.1} parent=1 // pred_check
      _
    $region11: #{tpu_custom_call.1} parent=1 // pred_check_branch
      %40 = sbr.rel (0) target = $region13
    $region12: #{tpu_custom_call.1} parent=1 // pred_region
      _
    $region13: #{tpu_custom_call.1} parent=1 // pred_fallthru
      _
    // Predicated region
    $region14: #{tpu_custom_call.1} parent=1 // pred_check
      _
    $region15: #{tpu_custom_call.1} parent=1 // pred_check_branch
      %42 = sbr.rel (0) target = $region17
    $region16: #{tpu_custom_call.1} parent=1 // pred_region
      _
    $region17: #{tpu_custom_call.1} parent=1 // pred_fallthru
      _
    // Predicated region
    $region18: #{tpu_custom_call.1} parent=1 // pred_check
      _
    $region19: #{tpu_custom_call.1} parent=1 // pred_check_branch
      %44 = sbr.rel (0) target = $region21
    $region20: #{tpu_custom_call.1} parent=1 // pred_region
      %s46 = ssub.s32 3072, 3072
      %47 = vsyncadd [#allocation7], %s46
      %s48 = sshll.u32 [#allocation8], 4
      %s49 = int_to_ptr.vmem [resolvable:$true] %s48
      %54 = dma.hbm_to_vmem [thread:$0]  %s4, 3072, %s49, [#allocation7], 128, 128, 8
    $region21: #{tpu_custom_call.1} parent=1 // pred_fallthru
      _
    // Predicated region
    $region22: #{tpu_custom_call.1} parent=1 // pred_check
      _
    $region23: #{tpu_custom_call.1} parent=1 // pred_check_branch
      %56 = sbr.rel (0) target = $region25
    $region24: #{tpu_custom_call.1} parent=1 // pred_region
      _
    $region25: #{tpu_custom_call.1} parent=1 // pred_fallthru
      _
    // Predicated region
    $region26: #{tpu_custom_call.1} parent=1 // pred_check
      _
    $region27: #{tpu_custom_call.1} parent=1 // pred_check_branch
      %58 = sbr.rel (0) target = $region29
    $region28: #{tpu_custom_call.1} parent=1 // pred_region
      _
    $region29: #{tpu_custom_call.1} parent=1 // pred_fallthru
      _
    // Predicated region
    $region30: #{tpu_custom_call.1} parent=1 // pred_check
      _
    $region31: #{tpu_custom_call.1} parent=1 // pred_check_branch
      %60 = sbr.rel (0) target = $region33
    $region32: #{tpu_custom_call.1} parent=1 // pred_region
      %61 = dma.done [#allocation4], 256
    $region33: #{tpu_custom_call.1} parent=1 // pred_fallthru
      _
    // Predicated region
    $region34: #{tpu_custom_call.1} parent=1 // pred_check
      _
    $region35: #{tpu_custom_call.1} parent=1 // pred_check_branch
      %63 = sbr.rel (0) target = $region37
    $region36: #{tpu_custom_call.1} parent=1 // pred_region
      %64 = dma.done [#allocation7], 512
    $region37: #{tpu_custom_call.1} parent=1 // pred_fallthru
      _
    // Predicated region
    $region38: #{tpu_custom_call.1} parent=1 // pred_check
      _
    $region39: #{tpu_custom_call.1} parent=1 // pred_check_branch
      %66 = sbr.rel (0) target = $region41
    $region40: #{tpu_custom_call.1} parent=1 // pred_region
      %67 = dma.done [#allocation7], 3072
    $region41: #{tpu_custom_call.1} parent=1 // pred_fallthru
      _
    %v68 = vlaneseq
    %v69 = vshrl.u32 %v68, 7
    %v70 = vadd.s32 %v69, 8
    %vm71 = vcmp.lt.s32.totalorder %v69, 0
    %v72 = vsub.s32 0, %v69
    %v73 = vsel %vm71, %v72, %v69
    %v74 = vshrl.u32 %v73, 3
    %v75 = vand.u32 %v73, 7
    %v76 = vsub.s32 0, %v75
    %v77 = vsel %vm71, %v76, %v75
    %vm78 = vcmp.lt.s32.totalorder %v70, 0
    %v79 = vsub.s32 0, %v70
    %v80 = vsel %vm78, %v79, %v70
    %v81 = vshrl.u32 %v80, 3
    %v82 = vand.u32 %v80, 7
    %v83 = vsub.s32 0, %v82
    %v84 = vsel %vm78, %v83, %v82
    %vm85 = vcmp.ne.s32.totalorder %v77, 0
    %vm86 = vcmp.ne.s32.totalorder %v84, 0
    %vm87 = vcmp.lt.s32.totalorder %v77, 0
    %vm88 = vcmp.lt.s32.totalorder %v84, 0
    %vm89 = vmand %vm87, %vm85
    %vm90 = vmand %vm88, %vm86
    %v91 = vadd.s32 %v77, 8
    %v92 = vadd.s32 %v84, 8
    %v93 = vsel %vm89, %v91, %v77
    %v94 = vsel %vm90, %v92, %v84
    %v95 = vld [vmem:[#allocation3] sm:$0xff]
    %v96 = vld [vmem:[#allocation3 + $0x8] sm:$0xff]
    %99 = vrot.lane.b32.xlu0 %v95, 120
    %v100 = vpop.permute.xlu0 %99
    %101 = vrot.lane.b32.xlu0 %v96, 120
    %v102 = vpop.permute.xlu0 %101
    %v105 = vrot.slane %v100, 7
    %v106 = vrot.slane %v102, 7
    %vm107 = vcmp.lt.s32.totalorder %v69, 1
    %v108 = vsel %vm107, %v105, %v106
    %v109 = vsel %vm107, %v106, %v105
    %vm110 = vcmp.eq.s32.totalorder %v93, 0
    %vm111 = vcmp.eq.s32.totalorder %v94, 0
    %v112 = vsel %vm110, 1, 0
    %v113 = vsel %vm111, 1, 0
    %vm114 = vcmp.eq.s32.totalorder %v112, 1
    %vm115 = vcmp.eq.s32.totalorder %v113, 1
    %v116 = vsel %vm114, 0.0, %v109
    %v117 = vsel %vm115, 0.0, %v108
    %v118 = vrot.slane %v95, 1
    %v119 = vrot.slane %v96, 1
    %vm120 = vcmp.lt.s32.totalorder %v69, 7
    %v121 = vsel %vm120, %v118, %v119
    %v122 = vsel %vm120, %v119, %v118
    %vm123 = vcmp.eq.s32.totalorder %v93, 7
    %vm124 = vcmp.eq.s32.totalorder %v94, 7
    %v125 = vsel %vm123, 1, 0
    %v126 = vsel %vm124, 1, 0
    %vm127 = vcmp.eq.s32.totalorder %v125, 1
    %vm128 = vcmp.eq.s32.totalorder %v126, 1
    %v129 = vsel %vm127, 0.0, %v121
    %v130 = vsel %vm128, 0.0, %v122
    %131 = vrot.lane.b32.xlu0 %v95, 8
    %v132 = vpop.permute.xlu0 %131
    %133 = vrot.lane.b32.xlu0 %v96, 8
    %v134 = vpop.permute.xlu0 %133
    %139 = vrot.lane.b32.xlu0 %v129, 24
    %v140 = vpop.permute.xlu0 %139
    %141 = vrot.lane.b32.xlu0 %v130, 24
    %v142 = vpop.permute.xlu0 %141
    %vm145 = vcmask 64512
    %v146 = vsel %vm145, %v116, %v132
    %v147 = vsel %vm145, %v117, %v134
    %vm148 = vcmask 195584
    %v149 = vsel %vm148, %v146, %v140
    %v150 = vsel %vm148, %v147, %v142
    %v151 = vld [vmem:[#allocation6] sm:$0xff]
    %v152 = vld [vmem:[#allocation6 + $0x8] sm:$0xff]
    %v153 = vld [vmem:[#allocation6 + $0x10] sm:$0xff]
    %v154 = vld [vmem:[#allocation6 + $0x18] sm:$0xff]
    %vm155 = vcmask 261120
    %v157 = vsel %vm155, %v149, 0
    %v160 = vsel %vm155, %v150, 0
    %162 = vmatprep.subr.mxu0 0.0
    %163 = vmatpush1.msra.mxu0 %v151
    %164 = vmatprep.subr.mxu0 0.0
    %165 = vmatpush1.msra.mxu0 %v152
    %166 = vmatprep.subr.mxu0 0.0
    %167 = vmatpush1.msra.mxu0 %v153
    %168 = vmatprep.subr.mxu0 0.0
    %169 = vmatpush1.msra.mxu0 %v154
    %170 = vmatprep.subr.mxu0 0.0
    %171 = vmatpush1.msra.mxu0 0.0
    %172 = vmatprep.subr.mxu0 0.0
    %173 = vmatpush1.msra.mxu0 0.0
    %174 = vmatprep.subr.mxu0 0.0
    %175 = vmatpush1.msra.mxu0 0.0
    %176 = vmatprep.subr.mxu0 0.0
    %177 = vmatpush1.msra.mxu0 0.0
    %178 = vmatprep.subr.mxu0 0.0
    %179 = vmatpush1.msra.mxu0 0.0
    %180 = vmatprep.subr.mxu0 0.0
    %181 = vmatpush1.msra.mxu0 0.0
    %182 = vmatprep.subr.mxu0 0.0
    %183 = vmatpush1.msra.mxu0 0.0
    %184 = vmatprep.subr.mxu0 0.0
    %185 = vmatpush1.msra.mxu0 0.0
    %186 = vmatprep.subr.mxu0 0.0
    %187 = vmatpush1.msra.mxu0 0.0
    %188 = vmatprep.subr.mxu0 0.0
    %189 = vmatpush1.msra.mxu0 0.0
    %190 = vmatprep.subr.mxu0 0.0
    %191 = vmatpush1.msra.mxu0 0.0
    %192 = vmatprep.subr.mxu0 0.0
    %193 = vmatpush1.msra.mxu0 0.0
    %194 = vmatprep.subr.mxu0 0.0
    %195 = vmatpush1.msra.mxu0 0.0
    %196 = vmatprep.subr.mxu0 0.0
    %197 = vmatpush1.msra.mxu0 0.0
    %198 = vmatprep.subr.mxu0 0.0
    %199 = vmatpush1.msra.mxu0 0.0
    %200 = vmatprep.subr.mxu0 0.0
    %201 = vmatpush1.msra.mxu0 0.0
    %202 = vmatprep.subr.mxu0 0.0
    %203 = vmatpush1.msra.mxu0 0.0
    %204 = vmatprep.subr.mxu0 0.0
    %205 = vmatpush1.msra.mxu0 0.0
    %206 = vmatprep.subr.mxu0 0.0
    %207 = vmatpush1.msra.mxu0 0.0
    %208 = vmatprep.subr.mxu0 0.0
    %209 = vmatpush1.msra.mxu0 0.0
    %210 = vmatprep.subr.mxu0 0.0
    %211 = vmatpush1.msra.mxu0 0.0
    %212 = vmatprep.subr.mxu0 0.0
    %213 = vmatpush1.msra.mxu0 0.0
    %214 = vmatprep.subr.mxu0 0.0
    %215 = vmatpush1.msra.mxu0 0.0
    %216 = vmatprep.subr.mxu0 0.0
    %217 = vmatpush1.msra.mxu0 0.0
    %218 = vmatprep.subr.mxu0 0.0
    %219 = vmatpush1.msra.mxu0 0.0
    %220 = vmatprep.subr.mxu0 0.0
    %221 = vmatpush1.msra.mxu0 0.0
    %222 = vmatprep.subr.mxu0 0.0
    %223 = vmatpush1.msra.mxu0 0.0
    %224 = vmatprep.subr.mxu0 0.0
    %225 = vmatpush1.msra.mxu0 0.0
    %226 = vmatprep.mubr.f32.mxu0 0.0
    %227 = vmatmul.mubr.f32.gmra.mrb[0].mxu0 %v157
    %v228 = vpop.f32.mrb[0].mxu0
    %v229 = vadd.f32 0.0, %v228
    %v230 = vpop.f32.mrb[0].mxu0
    %231 = vmatprep.mubr.f32.mxu0 0.0
    %232 = vmatmul.mubr.f32.gmra.mrb[0].mxu0 %v160
    %v233 = vpop.f32.mrb[0].mxu0
    %v234 = vadd.f32 0.0, %v233
    %v235 = vpop.f32.mrb[0].mxu0
    %236 = vdwg.mxu0
    %vm237 = vcmask 523264
    %v238 = vsel %vm237, %v229, 0.0
    %v239 = vsel %vm237, %v234, 0.0
    %v240 = vadd.f32 %v238, %v239
    %v241 = vrot.slane %v240, 4
    %v242 = vadd.f32 %v240, %v241
    %v243 = vrot.slane %v242, 2
    %v244 = vadd.f32 %v242, %v243
    %v245 = vrot.slane %v244, 1
    %v246 = vadd.f32 %v244, %v245
    %vm247 = vcmask 1048064
    %v248 = vsel %vm247, %v229, 0.0
    %v249 = vsel %vm247, %v234, 0.0
    %v250 = vadd.f32 %v248, %v249
    %v251 = vrot.slane %v250, 4
    %v252 = vadd.f32 %v250, %v251
    %v253 = vrot.slane %v252, 2
    %v254 = vadd.f32 %v252, %v253
    %v255 = vrot.slane %v254, 1
    %v256 = vadd.f32 %v254, %v255
    %258 = vrot.lane.b32.xlu0 %v256, 64
    %v259 = vpop.permute.xlu0 %258
    %v261 = vadd.f32 %v246, %v259
    %v262 = vmul.f32 %v229, %v229
    %v263 = vmul.f32 %v234, %v234
    %v264 = vsel %vm237, %v262, 0.0
    %v265 = vsel %vm237, %v263, 0.0
    %v266 = vadd.f32 %v264, %v265
    %v267 = vrot.slane %v266, 4
    %v268 = vadd.f32 %v266, %v267
    %v269 = vrot.slane %v268, 2
    %v270 = vadd.f32 %v268, %v269
    %v271 = vrot.slane %v270, 1
    %v272 = vadd.f32 %v270, %v271
    %v273 = vsel %vm247, %v262, 0.0
    %v274 = vsel %vm247, %v263, 0.0
    %v275 = vadd.f32 %v273, %v274
    %v276 = vrot.slane %v275, 4
    %v277 = vadd.f32 %v275, %v276
    %v278 = vrot.slane %v277, 2
    %v279 = vadd.f32 %v277, %v278
    %v280 = vrot.slane %v279, 1
    %v281 = vadd.f32 %v279, %v280
    %283 = vrot.lane.b32.xlu0 %v281, 64
    %v284 = vpop.permute.xlu0 %283
    %v286 = vadd.f32 %v272, %v284
    %v287 = vld [vmem:[%s2] sm:$0x1]
    %v288 = vld [vmem:[%s3] sm:$0x1]
    %v289 = vrcp.pop 32.0
    %v290 = vmul.f32 %v261, %v289
    %v291 = vmul.f32 %v286, %v289
    %v292 = vmul.f32 %v290, %v290
    %v293 = vsub.f32 %v291, %v292
    %v294 = vadd.f32 %v293, 1e-05
    %v295 = vrsqrt.pop %v294
    %v296 = vmul.f32 %v295, %v287
    %v297 = vmul.f32 %v290, %v296
    %v298 = vsub.f32 %v288, %v297
    %301 = vrot.lane.b32.xlu0 %v229, 64
    %v302 = vpop.permute.xlu0 %301
    %303 = vrot.lane.b32.xlu0 %v234, 64
    %v304 = vpop.permute.xlu0 %303
    %v307 = vmax.f32 %v229, %v302
    %v308 = vmax.f32 %v234, %v304
    %v309 = vlaneseq
    %v310 = vshrl.u32 %v309, 7
    %v311 = vsub.s32 0, %v310
    %v312 = vrot.slane %v296, %v311
    %v313 = vmul.f32 %v307, %v312
    %v314 = vmul.f32 %v308, %v312
    %v316 = vlaneseq
    %v317 = vshrl.u32 %v316, 7
    %v318 = vsub.s32 0, %v317
    %v319 = vrot.slane %v298, %v318
    %v321 = vadd.f32 %v313, %v319
    %v322 = vadd.f32 %v314, %v319
    %v323 = vmax.f32 %v321, 0.0
    %v324 = vmax.f32 %v322, 0.0
    %v325 = vrot.slane %v323, 7
    %v326 = vrot.slane %v324, 7
    %v327 = vsel %vm107, %v325, %v326
    %v328 = vsel %vm107, %v326, %v325
    %v329 = vsel %vm114, 0.0, %v328
    %v330 = vsel %vm115, 0.0, %v327
    %v331 = vrot.slane %v323, 1
    %v332 = vrot.slane %v324, 1
    %v333 = vsel %vm120, %v331, %v332
    %v334 = vsel %vm120, %v332, %v331
    %v335 = vsel %vm127, 0.0, %v333
    %v336 = vsel %vm128, 0.0, %v334
    %339 = vrot.lane.b32.xlu0 %v323, 64
    %v340 = vpop.permute.xlu0 %339
    %341 = vrot.lane.b32.xlu0 %v324, 64
    %v342 = vpop.permute.xlu0 %341
    %v345 = vsel %vm237, %v329, %v340
    %v346 = vsel %vm237, %v330, %v342
    %v347 = vld [vmem:[#allocation8] sm:$0xff]
    %v348 = vld [vmem:[#allocation8 + $0x8] sm:$0xff]
    %v349 = vld [vmem:[#allocation8 + $0x10] sm:$0xff]
    %v350 = vld [vmem:[#allocation8 + $0x18] sm:$0xff]
    %v351 = vld [vmem:[#allocation8 + $0x20] sm:$0xff]
    %v352 = vld [vmem:[#allocation8 + $0x28] sm:$0xff]
    %v353 = vld [vmem:[#allocation8 + $0x30] sm:$0xff]
    %v354 = vld [vmem:[#allocation8 + $0x38] sm:$0xff]
    %v355 = vld [vmem:[#allocation8 + $0x40] sm:$0xff]
    %v356 = vld [vmem:[#allocation8 + $0x48] sm:$0xff]
    %v357 = vld [vmem:[#allocation8 + $0x50] sm:$0xff]
    %v358 = vld [vmem:[#allocation8 + $0x58] sm:$0xff]
    %v359 = vld [vmem:[#allocation8 + $0x60] sm:$0xff]
    %v360 = vld [vmem:[#allocation8 + $0x68] sm:$0xff]
    %v361 = vld [vmem:[#allocation8 + $0x70] sm:$0xff]
    %v362 = vld [vmem:[#allocation8 + $0x78] sm:$0xff]
    %v363 = vld [vmem:[#allocation8 + $0x80] sm:$0xff]
    %v364 = vld [vmem:[#allocation8 + $0x88] sm:$0xff]
    %v365 = vld [vmem:[#allocation8 + $0x90] sm:$0xff]
    %v366 = vld [vmem:[#allocation8 + $0x98] sm:$0xff]
    %v367 = vld [vmem:[#allocation8 + $0xa0] sm:$0xff]
    %v368 = vld [vmem:[#allocation8 + $0xa8] sm:$0xff]
    %v369 = vld [vmem:[#allocation8 + $0xb0] sm:$0xff]
    %v370 = vld [vmem:[#allocation8 + $0xb8] sm:$0xff]
    %v372 = vsel %vm237, %v335, 0
    %v375 = vsel %vm237, %v336, 0
    %377 = vmatprep.subr.mxu0 0.0
    %378 = vmatpush1.msra.mxu0 %v347
    %379 = vmatprep.subr.mxu0 0.0
    %380 = vmatpush1.msra.mxu0 %v348
    %381 = vmatprep.subr.mxu0 0.0
    %382 = vmatpush1.msra.mxu0 %v349
    %383 = vmatprep.subr.mxu0 0.0
    %384 = vmatpush1.msra.mxu0 %v350
    %385 = vmatprep.subr.mxu0 0.0
    %386 = vmatpush1.msra.mxu0 %v351
    %387 = vmatprep.subr.mxu0 0.0
    %388 = vmatpush1.msra.mxu0 %v352
    %389 = vmatprep.subr.mxu0 0.0
    %390 = vmatpush1.msra.mxu0 %v353
    %391 = vmatprep.subr.mxu0 0.0
    %392 = vmatpush1.msra.mxu0 %v354
    %393 = vmatprep.subr.mxu0 0.0
    %394 = vmatpush1.msra.mxu0 %v355
    %395 = vmatprep.subr.mxu0 0.0
    %396 = vmatpush1.msra.mxu0 %v356
    %397 = vmatprep.subr.mxu0 0.0
    %398 = vmatpush1.msra.mxu0 %v357
    %399 = vmatprep.subr.mxu0 0.0
    %400 = vmatpush1.msra.mxu0 %v358
    %401 = vmatprep.subr.mxu0 0.0
    %402 = vmatpush1.msra.mxu0 %v359
    %403 = vmatprep.subr.mxu0 0.0
    %404 = vmatpush1.msra.mxu0 %v360
    %405 = vmatprep.subr.mxu0 0.0
    %406 = vmatpush1.msra.mxu0 %v361
    %407 = vmatprep.subr.mxu0 0.0
    %408 = vmatpush1.msra.mxu0 %v362
    %409 = vmatprep.subr.mxu0 0.0
    %410 = vmatpush1.msra.mxu0 %v363
    %411 = vmatprep.subr.mxu0 0.0
    %412 = vmatpush1.msra.mxu0 %v364
    %413 = vmatprep.subr.mxu0 0.0
    %414 = vmatpush1.msra.mxu0 %v365
    %415 = vmatprep.subr.mxu0 0.0
    %416 = vmatpush1.msra.mxu0 %v366
    %417 = vmatprep.subr.mxu0 0.0
    %418 = vmatpush1.msra.mxu0 %v367
    %419 = vmatprep.subr.mxu0 0.0
    %420 = vmatpush1.msra.mxu0 %v368
    %421 = vmatprep.subr.mxu0 0.0
    %422 = vmatpush1.msra.mxu0 %v369
    %423 = vmatprep.subr.mxu0 0.0
    %424 = vmatpush1.msra.mxu0 %v370
    %425 = vmatprep.subr.mxu0 0.0
    %426 = vmatpush1.msra.mxu0 0.0
    %427 = vmatprep.subr.mxu0 0.0
    %428 = vmatpush1.msra.mxu0 0.0
    %429 = vmatprep.subr.mxu0 0.0
    %430 = vmatpush1.msra.mxu0 0.0
    %431 = vmatprep.subr.mxu0 0.0
    %432 = vmatpush1.msra.mxu0 0.0
    %433 = vmatprep.subr.mxu0 0.0
    %434 = vmatpush1.msra.mxu0 0.0
    %435 = vmatprep.subr.mxu0 0.0
    %436 = vmatpush1.msra.mxu0 0.0
    %437 = vmatprep.subr.mxu0 0.0
    %438 = vmatpush1.msra.mxu0 0.0
    %439 = vmatprep.subr.mxu0 0.0
    %440 = vmatpush1.msra.mxu0 0.0
    %441 = vmatprep.mubr.f32.mxu0 %v372
    %442 = vmatmul.mubr.f32.gmra.mrb[0].mxu0 %v345
    %v443 = vpop.f32.mrb[0].mxu0
    %v444 = vadd.f32 0.0, %v443
    %v445 = vpop.f32.mrb[0].mxu0
    %446 = vmatprep.mubr.f32.mxu0 %v375
    %447 = vmatmul.mubr.f32.gmra.mrb[0].mxu0 %v346
    %v448 = vpop.f32.mrb[0].mxu0
    %v449 = vadd.f32 0.0, %v448
    %v450 = vpop.f32.mrb[0].mxu0
    %451 = vdwg.mxu0
    %v452 = vadd.f32 %v444, %v449
    %v453 = vrot.slane %v452, 4
    %v454 = vadd.f32 %v452, %v453
    %v455 = vrot.slane %v454, 2
    %v456 = vadd.f32 %v454, %v455
    %v457 = vrot.slane %v456, 1
    %v458 = vadd.f32 %v456, %v457
    %v459 = vmul.f32 %v444, %v444
    %v460 = vmul.f32 %v449, %v449
    %v461 = vadd.f32 %v459, %v460
    %v462 = vrot.slane %v461, 4
    %v463 = vadd.f32 %v461, %v462
    %v464 = vrot.slane %v463, 2
    %v465 = vadd.f32 %v463, %v464
    %v466 = vrot.slane %v465, 1
    %v467 = vadd.f32 %v465, %v466
    %v468 = vld [vmem:[%s5] sm:$0x1]
    %v469 = vld [vmem:[%s6] sm:$0x1]
    %v470 = vrcp.pop 16.0
    %v471 = vmul.f32 %v458, %v470
    %v472 = vmul.f32 %v467, %v470
    %v473 = vmul.f32 %v471, %v471
    %v474 = vsub.f32 %v472, %v473
    %v475 = vadd.f32 %v474, 1e-05
    %v476 = vrsqrt.pop %v475
    %v477 = vmul.f32 %v476, %v468
    %v478 = vmul.f32 %v471, %v477
    %v479 = vsub.f32 %v469, %v478
    %v480 = vrot.slane %v444, 1
    %v481 = vrot.slane %v449, 1
    %v482 = vsel %vm120, %v480, %v481
    %v483 = vsel %vm120, %v481, %v480
    %v484 = vmax.f32 %v444, %v482
    %v485 = vmax.f32 %v449, %v483
    %486 = vst [vmem:[#allocation2] sm:$0xff] %v484
    %487 = vst [vmem:[#allocation2 + $0x8] sm:$0xff] %v485
    %v488 = vld [vmem:[#allocation2] ss:$2 sm:$0xff]
    %v489 = vlaneseq
    %v490 = vshrl.u32 %v489, 7
    %v491 = vsub.s32 0, %v490
    %v492 = vrot.slane %v477, %v491
    %v493 = vmul.f32 %v488, %v492
    %v495 = vlaneseq
    %v496 = vshrl.u32 %v495, 7
    %v497 = vsub.s32 0, %v496
    %v498 = vrot.slane %v479, %v497
    %v500 = vadd.f32 %v493, %v498
    %v501 = vmax.f32 %v500, 0.0
    %502 = vst [vmem:[#allocation9] sm:$0xff] %v501
    // Predicated region
    $region42: #{tpu_custom_call.1} parent=1 // pred_check
      _
    $region43: #{tpu_custom_call.1} parent=1 // pred_check_branch
      %504 = sbr.rel (0) target = $region45
    $region44: #{tpu_custom_call.1} parent=1 // pred_region
      %s506 = ssub.s32 128, 128
      %507 = vsyncadd [#allocation5], %s506
      %s509 = sshll.u32 [#allocation9], 4
      %s510 = int_to_ptr.vmem [resolvable:$true] %s509
      %512 = dma.vmem_to_hbm [thread:$0]  %s510, 128, %s7, [#allocation5]
    $region45: #{tpu_custom_call.1} parent=1 // pred_fallthru
      _
    // Predicated region
    $region46: #{tpu_custom_call.1} parent=1 // pred_check
      _
    $region47: #{tpu_custom_call.1} parent=1 // pred_check_branch
      %514 = sbr.rel (0) target = $region49
    $region48: #{tpu_custom_call.1} parent=1 // pred_region
      %515 = dma.done [#allocation5], 128
    $region49: #{tpu_custom_call.1} parent=1 // pred_fallthru
      _
    %516 = vsyncpa [#allocation4], 1
    %517 = vsyncpa [#allocation7], 1
    %518 = vsyncpa [#allocation5], 1

</llo_original>
